<compile_context>
chip_gen: v5e
topology: v5e:2x2
jax: 0.10.0
libtpu: 0.0.40
codegen_flags: <defaults>
</compile_context>

<pallas_src>
import functools

import jax
import jax.numpy as jnp
from jax import lax
from jax.experimental import pallas as pl
from jax.experimental.pallas import tpu as pltpu


# ---------------------------------------------------------------------------
# Helpers
# ---------------------------------------------------------------------------
def _tpu_vmem_capacity_bytes():
    try:
        return int(pltpu.get_tpu_info().vmem_capacity_bytes)
    except Exception:
        return 128 * 1024 * 1024


def _pick_tile(n, target):
    """Largest tile <= target that divides n (falls back to n itself)."""
    if n <= target:
        return n
    t = target
    while t >= 8:
        if n % t == 0:
            return t
        t //= 2
    return n


# ---------------------------------------------------------------------------
# Kernel 1: fused Q / K / V projections (nn.Linear, bias=False -> x @ W.T)
# ---------------------------------------------------------------------------
def _qkv_proj_kernel(q_ref, k_ref, v_ref, wq_ref, wk_ref, wv_ref,
                     qp_ref, kp_ref, vp_ref, *, compute_dtype):
    # Contract on the weight's second dim (== x @ W.T): no transpose anywhere.
    dn = (((1,), (1,)), ((), ()))

    def proj(x_ref, w_ref, o_ref):
        o_ref[...] = lax.dot_general(
            x_ref[...].astype(compute_dtype), w_ref[...], dn,
            preferred_element_type=jnp.float32).astype(o_ref.dtype)

    proj(q_ref, wq_ref, qp_ref)
    proj(k_ref, wk_ref, kp_ref)
    proj(v_ref, wv_ref, vp_ref)


# ---------------------------------------------------------------------------
# Kernel 2: per-(batch, q-tile) attention, heads unrolled, fused out-projection
# ---------------------------------------------------------------------------
def _make_attn_kernel(n_heads, head_dim, with_mask, compute_dtype):
    inv_sqrt_hd = 1.0 / (head_dim ** 0.5)
    dn_t = (((1,), (1,)), ((), ()))   # contract rhs dim 1  (== lhs @ rhs.T)

    def kernel(*refs):
        if with_mask:
            qh_ref, kh_ref, vh_ref, wo_ref, mask_ref, out_ref, acc_ref = refs
        else:
            qh_ref, kh_ref, vh_ref, wo_ref, out_ref, acc_ref = refs
            mask_ref = None

        if mask_ref is not None:
            masked = mask_ref[...] != 0                       # (Tq, L), hoisted

        # Static head loop: context of head h lands in a static column slice of the
        # (Tq, D) f32 scratch => the 'b n i d -> b i (n d)' merge is free.
        for h in range(n_heads):
            q = qh_ref[0, h].astype(compute_dtype)            # (Tq, hd)
            k = kh_ref[0, h].astype(compute_dtype)            # (L,  hd)
            v = vh_ref[0, h].astype(compute_dtype)            # (L,  hd)

            # scores[i, j] = sum_d q[i, d] * k[j, d]
            s = lax.dot_general(q, k, dn_t,
                                preferred_element_type=jnp.float32)     # (Tq, L)
            if mask_ref is not None:
                # masked_fill_ happens BEFORE the /sqrt(hd) scaling in the reference.
                s = jnp.where(masked, jnp.float32(-1e9), s)
            s = s * jnp.float32(inv_sqrt_hd)

            m = jnp.max(s, axis=-1, keepdims=True)
            p = jnp.exp(s - m)
            denom = jnp.sum(p, axis=-1, keepdims=True)
            w = p * pl.reciprocal(denom, approx=True)         # divide -> EUP slot
            # TODO(synk): attn_drop (nn.Dropout) is stochastic in train mode; identity
            # here (eval).  A training variant would use pltpu.prng_seed/prng_random_bits.

            ctx = jnp.dot(w.astype(compute_dtype), v,
                          preferred_element_type=jnp.float32)           # (Tq, hd)
            acc_ref[:, h * head_dim:(h + 1) * head_dim] = ctx

        # Single full-contraction output projection: (Tq, D) @ Wo.T -> (Tq, D).
        out = lax.dot_general(acc_ref[...].astype(compute_dtype), wo_ref[...], dn_t,
                              preferred_element_type=jnp.float32)
        out_ref[...] = out[None].astype(out_ref.dtype)

    return kernel


# ---------------------------------------------------------------------------
# Wrapper
# ---------------------------------------------------------------------------
def multi_head_attention(q, k, v, wq, wk, wv, wo, n_heads, mask=None,
                         use_bf16=False):
    B, L, D = q.shape
    hd = D // n_heads
    assert hd * n_heads == D
    R = B * L

    compute_dtype = jnp.bfloat16 if use_bf16 else jnp.float32

    vmem_cap = _tpu_vmem_capacity_bytes()
    small_vmem = vmem_cap < 100 * 1024 * 1024          # v7x-class (64 MiB physical)
    vmem_limit = (48 if small_vmem else 64) * 1024 * 1024
    target_rows = 512 if small_vmem else 1024

    # ---- Stage 1: fused Q/K/V projections over coarse row tiles ----
    q2 = q.reshape(R, D)
    k2 = k.reshape(R, D)
    v2 = v.reshape(R, D)
    wq_c = wq.astype(compute_dtype)
    wk_c = wk.astype(compute_dtype)
    wv_c = wv.astype(compute_dtype)
    wo_c = wo.astype(compute_dtype)

    tile_r = _pick_tile(R, target_rows)
    row_spec = pl.BlockSpec((tile_r, D), lambda i: (i, 0))
    w_spec = pl.BlockSpec((D, D), lambda i: (0, 0))       # resident, fetched once
    proj_out = jax.ShapeDtypeStruct((R, D), compute_dtype)

    qp, kp, vp = pl.pallas_call(
        functools.partial(_qkv_proj_kernel, compute_dtype=compute_dtype),
        out_shape=(proj_out, proj_out, proj_out),
        grid_spec=pltpu.PrefetchScalarGridSpec(
            num_scalar_prefetch=0,
            grid=(R // tile_r,),
            in_specs=[row_spec, row_spec, row_spec, w_spec, w_spec, w_spec],
            out_specs=(row_spec, row_spec, row_spec)),
        compiler_params=pltpu.CompilerParams(
            dimension_semantics=("parallel",),
            vmem_limit_bytes=vmem_limit),
    )(q2, k2, v2, wq_c, wk_c, wv_c)

    # torch's raw `.view(b, n_heads, l, head_dim)` == plain contiguous reshape
    # (NOT the usual per-token head split).  Done once in the wrapper.
    qh = qp.reshape(B, n_heads, L, hd)
    kh = kp.reshape(B, n_heads, L, hd)
    vh = vp.reshape(B, n_heads, L, hd)

    # ---- Stage 2: attention + head merge + output projection ----
    Tq = _pick_tile(L, 256)            # query tile: extra parallel axis, bounds score tile
    nQ = L // Tq

    q_spec = pl.BlockSpec((1, n_heads, Tq, hd), lambda b, qi: (b, 0, qi, 0))
    kv_spec = pl.BlockSpec((1, n_heads, L, hd), lambda b, qi: (b, 0, 0, 0))
    wo_spec = pl.BlockSpec((D, D), lambda b, qi: (0, 0))   # fully resident Wo
    in_specs = [q_spec, kv_spec, kv_spec, wo_spec]
    inputs = [qh, kh, vh, wo_c]

    with_mask = mask is not None
    if with_mask:
        mask2 = jnp.asarray(mask)
        if mask2.ndim > 2:
            # TODO(synk): per-batch / per-head masks not supported; only (L, L) masks.
            mask2 = mask2.reshape(mask2.shape[-2:])
        assert mask2.shape == (L, L)
        mask_i8 = mask2.astype(jnp.int8)                    # (L, L) passed once, no B*H bcast
        in_specs.append(pl.BlockSpec((Tq, L), lambda b, qi: (qi, 0)))
        inputs.append(mask_i8)

    out = pl.pallas_call(
        _make_attn_kernel(n_heads, hd, with_mask, compute_dtype),
        out_shape=jax.ShapeDtypeStruct((B, L, D), jnp.float32),
        grid_spec=pltpu.PrefetchScalarGridSpec(
            num_scalar_prefetch=0,
            grid=(B, nQ),
            in_specs=in_specs,
            out_specs=pl.BlockSpec((1, Tq, D), lambda b, qi: (b, qi, 0)),
            scratch_shapes=[pltpu.VMEM((Tq, D), jnp.float32)]),
        compiler_params=pltpu.CompilerParams(
            dimension_semantics=("parallel", "parallel"),
            vmem_limit_bytes=vmem_limit),
    )(*inputs)
    return out


# ---------------------------------------------------------------------------
# Pure-JAX reference replicating the PyTorch module exactly (eval mode)
# ---------------------------------------------------------------------------
def mha_ref(q, k, v, wq, wk, wv, wo, n_heads, mask=None):
    with jax.default_matmul_precision("highest"):
        B, L, D = q.shape
        hd = D // n_heads
        qp = q @ wq.T
        kp = k @ wk.T
        vp = v @ wv.T
        qh = qp.reshape(B, n_heads, L, hd)     # torch raw .view semantics
        kh = kp.reshape(B, n_heads, L, hd)
        vh = vp.reshape(B, n_heads, L, hd)
        s = jnp.einsum("bnid,bnjd->bnij", qh, kh)
        if mask is not None:
            s = jnp.where(mask, jnp.float32(-1e9), s)
        s = s / (hd ** 0.5)
        w = jax.nn.softmax(s, axis=-1)
        x = jnp.einsum("bnij,bnjd->bnid", w, vh)
        x = jnp.transpose(x, (0, 2, 1, 3)).reshape(B, L, D)   # 'b n i d -> b i (n d)'
        return x @ wo.T


if __name__ == "__main__":
    # Small shapes consistent with the module: batch=2, seq=8, dim=32, heads=4.
    B, L, D, H = 2, 8, 32, 4

    key = jax.random.PRNGKey(0)
    ks = jax.random.split(key, 7)
    q = jax.random.normal(ks[0], (B, L, D), jnp.float32)
    k = jax.random.normal(ks[1], (B, L, D), jnp.float32)
    v = jax.random.normal(ks[2], (B, L, D), jnp.float32)
    w_scale = 1.0 / (D ** 0.5)
    wq = jax.random.normal(ks[3], (D, D), jnp.float32) * w_scale
    wk = jax.random.normal(ks[4], (D, D), jnp.float32) * w_scale
    wv = jax.random.normal(ks[5], (D, D), jnp.float32) * w_scale
    wo = jax.random.normal(ks[6], (D, D), jnp.float32) * w_scale

    # No-mask path (mask=None default in the reference forward), fp32.
    out = multi_head_attention(q, k, v, wq, wk, wv, wo, H, mask=None)
    out = jax.block_until_ready(out)
    ref = mha_ref(q, k, v, wq, wk, wv, wo, H, mask=None)
    assert out.shape == (B, L, D)
    assert jnp.allclose(out, ref, atol=2e-2, rtol=2e-2)

    # Masked path (causal mask: True where the score is masked out), fp32.
    causal_mask = jnp.triu(jnp.ones((L, L), dtype=bool), k=1)
    out_m = multi_head_attention(q, k, v, wq, wk, wv, wo, H, mask=causal_mask)
    out_m = jax.block_until_ready(out_m)
    ref_m = mha_ref(q, k, v, wq, wk, wv, wo, H, mask=causal_mask)
    assert jnp.allclose(out_m, ref_m, atol=2e-2, rtol=2e-2)

    # bf16 MXU operands with f32 accumulation (perf path) — looser tolerance.
    out_bf = multi_head_attention(q, k, v, wq, wk, wv, wo, H, mask=causal_mask,
                                  use_bf16=True)
    out_bf = jax.block_until_ready(out_bf)
    assert jnp.allclose(out_bf, ref_m, atol=1e-1, rtol=1e-1)

    print("KERNEL_OK")
</pallas_src>

<mosaic_0001>
module attributes {stable_mosaic.version = 11 : i64} {
  func.func @_qkv_proj_kernel(%arg0: i32, %arg1: memref<16x32xf32, #tpu.memory_space<vmem>>, %arg2: memref<16x32xf32, #tpu.memory_space<vmem>>, %arg3: memref<16x32xf32, #tpu.memory_space<vmem>>, %arg4: memref<32x32xf32, #tpu.memory_space<vmem>>, %arg5: memref<32x32xf32, #tpu.memory_space<vmem>>, %arg6: memref<32x32xf32, #tpu.memory_space<vmem>>, %arg7: memref<16x32xf32, #tpu.memory_space<vmem>>, %arg8: memref<16x32xf32, #tpu.memory_space<vmem>>, %arg9: memref<16x32xf32, #tpu.memory_space<vmem>>) attributes {dimension_semantics = [#tpu.dimension_semantics<parallel>], iteration_bounds = array<i64: 1>, scalar_prefetch = 0 : i64, scratch_operands = 0 : i64, tpu.core_type = #tpu.core_type<tc>, window_params = [{transform_indices = @transform_0, window_bounds = array<i64: 16, 32>}, {transform_indices = @transform_1, window_bounds = array<i64: 16, 32>}, {transform_indices = @transform_2, window_bounds = array<i64: 16, 32>}, {pipeline_mode = #tpu.pipeline_mode<synchronous>, transform_indices = @transform_3, window_bounds = array<i64: 32, 32>}, {pipeline_mode = #tpu.pipeline_mode<synchronous>, transform_indices = @transform_4, window_bounds = array<i64: 32, 32>}, {pipeline_mode = #tpu.pipeline_mode<synchronous>, transform_indices = @transform_5, window_bounds = array<i64: 32, 32>}, {transform_indices = @transform_6, window_bounds = array<i64: 16, 32>}, {transform_indices = @transform_7, window_bounds = array<i64: 16, 32>}, {transform_indices = @transform_8, window_bounds = array<i64: 16, 32>}]} {
    %c0 = arith.constant 0 : index
    %c0_0 = arith.constant 0 : index
    %0 = vector.load %arg1[%c0, %c0_0] : memref<16x32xf32, #tpu.memory_space<vmem>>, vector<16x32xf32>
    %c0_1 = arith.constant 0 : index
    %c0_2 = arith.constant 0 : index
    %1 = vector.load %arg4[%c0_1, %c0_2] : memref<32x32xf32, #tpu.memory_space<vmem>>, vector<32x32xf32>
    %cst = arith.constant dense<0.000000e+00> : vector<16x32xf32>
    %2 = tpu.matmul %0, %1, %cst {dimension_numbers = #tpu.dot_dimension_numbers<[1], [1], [0], [0], [0, 0, 1, 0], [], []>} : vector<16x32xf32>, vector<32x32xf32>, vector<16x32xf32> -> vector<16x32xf32>
    %c0_3 = arith.constant 0 : index
    %c0_4 = arith.constant 0 : index
    %3 = vector.load %arg7[%c0_3, %c0_4] : memref<16x32xf32, #tpu.memory_space<vmem>>, vector<16x32xf32>
    tpu.vector_store %arg7[%c0_3, %c0_4], %2 {strides = array<i32>} : memref<16x32xf32, #tpu.memory_space<vmem>>, vector<16x32xf32>,
    %c0_5 = arith.constant 0 : index
    %c0_6 = arith.constant 0 : index
    %4 = vector.load %arg2[%c0_5, %c0_6] : memref<16x32xf32, #tpu.memory_space<vmem>>, vector<16x32xf32>
    %c0_7 = arith.constant 0 : index
    %c0_8 = arith.constant 0 : index
    %5 = vector.load %arg5[%c0_7, %c0_8] : memref<32x32xf32, #tpu.memory_space<vmem>>, vector<32x32xf32>
    %cst_9 = arith.constant dense<0.000000e+00> : vector<16x32xf32>
    %6 = tpu.matmul %4, %5, %cst_9 {dimension_numbers = #tpu.dot_dimension_numbers<[1], [1], [0], [0], [0, 0, 1, 0], [], []>} : vector<16x32xf32>, vector<32x32xf32>, vector<16x32xf32> -> vector<16x32xf32>
    %c0_10 = arith.constant 0 : index
    %c0_11 = arith.constant 0 : index
    %7 = vector.load %arg8[%c0_10, %c0_11] : memref<16x32xf32, #tpu.memory_space<vmem>>, vector<16x32xf32>
    tpu.vector_store %arg8[%c0_10, %c0_11], %6 {strides = array<i32>} : memref<16x32xf32, #tpu.memory_space<vmem>>, vector<16x32xf32>,
    %c0_12 = arith.constant 0 : index
    %c0_13 = arith.constant 0 : index
    %8 = vector.load %arg3[%c0_12, %c0_13] : memref<16x32xf32, #tpu.memory_space<vmem>>, vector<16x32xf32>
    %c0_14 = arith.constant 0 : index
    %c0_15 = arith.constant 0 : index
    %9 = vector.load %arg6[%c0_14, %c0_15] : memref<32x32xf32, #tpu.memory_space<vmem>>, vector<32x32xf32>
    %cst_16 = arith.constant dense<0.000000e+00> : vector<16x32xf32>
    %10 = tpu.matmul %8, %9, %cst_16 {dimension_numbers = #tpu.dot_dimension_numbers<[1], [1], [0], [0], [0, 0, 1, 0], [], []>} : vector<16x32xf32>, vector<32x32xf32>, vector<16x32xf32> -> vector<16x32xf32>
    %c0_17 = arith.constant 0 : index
    %c0_18 = arith.constant 0 : index
    %11 = vector.load %arg9[%c0_17, %c0_18] : memref<16x32xf32, #tpu.memory_space<vmem>>, vector<16x32xf32>
    tpu.vector_store %arg9[%c0_17, %c0_18], %10 {strides = array<i32>} : memref<16x32xf32, #tpu.memory_space<vmem>>, vector<16x32xf32>,
    return
  }
  func.func @transform_0(%arg0: i32) -> (i32, i32) {
    %c0_i32 = arith.constant 0 : i32
    %c0_i32_0 = arith.constant 0 : i32
    return %arg0, %c0_i32 : i32, i32
  }
  func.func @transform_1(%arg0: i32) -> (i32, i32) {
    %c0_i32 = arith.constant 0 : i32
    %c0_i32_0 = arith.constant 0 : i32
    return %arg0, %c0_i32 : i32, i32
  }
  func.func @transform_2(%arg0: i32) -> (i32, i32) {
    %c0_i32 = arith.constant 0 : i32
    %c0_i32_0 = arith.constant 0 : i32
    return %arg0, %c0_i32 : i32, i32
  }
  func.func @transform_3(%arg0: i32) -> (i32, i32) {
    %c0_i32 = arith.constant 0 : i32
    %c0_i32_0 = arith.constant 0 : i32
    %c0_i32_1 = arith.constant 0 : i32
    return %c0_i32, %c0_i32_0 : i32, i32
  }
  func.func @transform_4(%arg0: i32) -> (i32, i32) {
    %c0_i32 = arith.constant 0 : i32
    %c0_i32_0 = arith.constant 0 : i32
    %c0_i32_1 = arith.constant 0 : i32
    return %c0_i32, %c0_i32_0 : i32, i32
  }
  func.func @transform_5(%arg0: i32) -> (i32, i32) {
    %c0_i32 = arith.constant 0 : i32
    %c0_i32_0 = arith.constant 0 : i32
    %c0_i32_1 = arith.constant 0 : i32
    return %c0_i32, %c0_i32_0 : i32, i32
  }
  func.func @transform_6(%arg0: i32) -> (i32, i32) {
    %c0_i32 = arith.constant 0 : i32
    %c0_i32_0 = arith.constant 0 : i32
    return %arg0, %c0_i32 : i32, i32
  }
  func.func @transform_7(%arg0: i32) -> (i32, i32) {
    %c0_i32 = arith.constant 0 : i32
    %c0_i32_0 = arith.constant 0 : i32
    return %arg0, %c0_i32 : i32, i32
  }
  func.func @transform_8(%arg0: i32) -> (i32, i32) {
    %c0_i32 = arith.constant 0 : i32
    %c0_i32_0 = arith.constant 0 : i32
    return %arg0, %c0_i32 : i32, i32
  }
}

</mosaic_0001>

<llo_original>
// kernel: tpu_custom_call.1
$region0: #{tpu_custom_call.1}
  #allocation0 [shape = 'u32[]', space=smem, size = 0x4, offset = 0x4, fixed_abs, tag = 'smem constant byte address 0x4 - core index']
  #allocation1 [shape = 'u32[72,128]{1,0:T(1,128)}', space=vmem, size = 0x9000, scoped, tag = 'internal scratch']
  %s0 = inlined_call_operand.hbm [shape: f32[16,32], index: 0, kind: input, shape index: {}]
  %s1 = inlined_call_operand.hbm [shape: f32[16,32], index: 1, kind: input, shape index: {}]
  %s2 = inlined_call_operand.hbm [shape: f32[16,32], index: 2, kind: input, shape index: {}]
  %s3 = inlined_call_operand.hbm [shape: f32[32,32], index: 3, kind: input, shape index: {}]
  %s4 = inlined_call_operand.hbm [shape: f32[32,32], index: 4, kind: input, shape index: {}]
  %s5 = inlined_call_operand.hbm [shape: f32[32,32], index: 5, kind: input, shape index: {}]
  %s6 = inlined_call_operand.hbm [shape: f32[16,32], index: 6, kind: output, shape index: {0}]
  %s7 = inlined_call_operand.hbm [shape: f32[16,32], index: 7, kind: output, shape index: {1}]
  %s8 = inlined_call_operand.hbm [shape: f32[16,32], index: 8, kind: output, shape index: {2}]
  %9 = xla_tuple %s6, %s7, %s8
  %s10 = sld [smem:[#allocation0]]
  $region74: #{tpu_custom_call.1} parent=0
    _
  %s12 = ssub.s32 1, %s10
  %s13 = scalar_select 0, %s12, %s10
  $region1: #{tpu_custom_call.1} parent=0
    #allocation2 [shape = 'u8[8192]{0}', space=vmem, size = 0x2000, scoped, tag = 'input window, operand 0, single buffered']
    #allocation3 [shape = 's32[1]{0}', space=sflag, size = 0x4, scoped, tag = 'scoped memory for tpu_custom_call.1']
    #allocation4 [shape = 's32[1]{0}', space=sflag, size = 0x4, scoped, tag = 'scoped memory for tpu_custom_call.1']
    #allocation5 [shape = 'u8[8192]{0}', space=vmem, size = 0x2000, scoped, tag = 'input window, operand 1, single buffered']
    #allocation6 [shape = 's32[1]{0}', space=sflag, size = 0x4, scoped, tag = 'scoped memory for tpu_custom_call.1']
    #allocation7 [shape = 'u8[8192]{0}', space=vmem, size = 0x2000, scoped, tag = 'input window, operand 2, single buffered']
    #allocation8 [shape = 'u8[16384]{0}', space=vmem, size = 0x4000, scoped, tag = 'input window, operand 3, single buffered']
    #allocation9 [shape = 's32[1]{0}', space=sflag, size = 0x4, scoped, tag = 'scoped memory for tpu_custom_call.1']
    #allocation10 [shape = 'u8[16384]{0}', space=vmem, size = 0x4000, scoped, tag = 'input window, operand 4, single buffered']
    #allocation11 [shape = 'u8[16384]{0}', space=vmem, size = 0x4000, scoped, tag = 'input window, operand 5, single buffered']
    #allocation12 [shape = 's32[1]{0}', space=sflag, size = 0x4, scoped, tag = 'scoped memory for tpu_custom_call.1']
    #allocation13 [shape = 'u8[8192]{0}', space=vmem, size = 0x2000, scoped, tag = 'output window, operand 0, single buffered']
    #allocation14 [shape = 'u8[8192]{0}', space=vmem, size = 0x2000, scoped, tag = 'output window, operand 1, single buffered']
    #allocation15 [shape = 's32[1]{0}', space=sflag, size = 0x4, scoped, tag = 'scoped memory for tpu_custom_call.1']
    #allocation16 [shape = 'u8[8192]{0}', space=vmem, size = 0x2000, scoped, tag = 'output window, operand 2, single buffered']
    %14 = vsyncpa [#allocation3], 0
    %15 = vsyncpa [#allocation6], 0
    %16 = vsyncpa [#allocation9], 0
    %17 = vsyncpa [#allocation12], 0
    %18 = vsyncpa [#allocation4], 0
    %19 = vsyncpa [#allocation15], 0
    // Predicated region
    $region2: #{tpu_custom_call.1} parent=1 // pred_check
      _
    $region3: #{tpu_custom_call.1} parent=1 // pred_check_branch
      %21 = sbr.rel (0) target = $region5
    $region4: #{tpu_custom_call.1} parent=1 // pred_region
      %23 = vsyncadd [#allocation3], 0
      %s24 = sshll.u32 %s0, 4
      %s25 = int_to_ptr.hbm [resolvable:$true] %s24
      %s26 = sshll.u32 [#allocation2], 4
      %s27 = int_to_ptr.vmem [resolvable:$true] %s26
      %32 = dma.hbm_to_vmem [thread:$0]  %s25, 256, %s27, [#allocation3], 128, 128, 8
    $region5: #{tpu_custom_call.1} parent=1 // pred_fallthru
      _
    // Predicated region
    $region6: #{tpu_custom_call.1} parent=1 // pred_check
      _
    $region7: #{tpu_custom_call.1} parent=1 // pred_check_branch
      %34 = sbr.rel (0) target = $region9
    $region8: #{tpu_custom_call.1} parent=1 // pred_region
      %36 = vsyncadd [#allocation6], 0
      %s37 = sshll.u32 %s1, 4
      %s38 = int_to_ptr.hbm [resolvable:$true] %s37
      %s39 = sshll.u32 [#allocation5], 4
      %s40 = int_to_ptr.vmem [resolvable:$true] %s39
      %45 = dma.hbm_to_vmem [thread:$0]  %s38, 256, %s40, [#allocation6], 128, 128, 8
    $region9: #{tpu_custom_call.1} parent=1 // pred_fallthru
      _
    // Predicated region
    $region10: #{tpu_custom_call.1} parent=1 // pred_check
      _
    $region11: #{tpu_custom_call.1} parent=1 // pred_check_branch
      %47 = sbr.rel (0) target = $region13
    $region12: #{tpu_custom_call.1} parent=1 // pred_region
      %49 = vsyncadd [#allocation6], 0
      %s50 = sshll.u32 %s2, 4
      %s51 = int_to_ptr.hbm [resolvable:$true] %s50
      %s52 = sshll.u32 [#allocation7], 4
      %s53 = int_to_ptr.vmem [resolvable:$true] %s52
      %58 = dma.hbm_to_vmem [thread:$0]  %s51, 256, %s53, [#allocation6], 128, 128, 8
    $region13: #{tpu_custom_call.1} parent=1 // pred_fallthru
      _
    // Predicated region
    $region14: #{tpu_custom_call.1} parent=1 // pred_check
      _
    $region15: #{tpu_custom_call.1} parent=1 // pred_check_branch
      %60 = sbr.rel (0) target = $region17
    $region16: #{tpu_custom_call.1} parent=1 // pred_region
      %62 = vsyncadd [#allocation9], 0
      %s63 = sshll.u32 %s3, 4
      %s64 = int_to_ptr.hbm [resolvable:$true] %s63
      %s65 = sshll.u32 [#allocation8], 4
      %s66 = int_to_ptr.vmem [resolvable:$true] %s65
      %71 = dma.hbm_to_vmem [thread:$0]  %s64, 512, %s66, [#allocation9], 128, 128, 8
    $region17: #{tpu_custom_call.1} parent=1 // pred_fallthru
      _
    // Predicated region
    $region18: #{tpu_custom_call.1} parent=1 // pred_check
      _
    $region19: #{tpu_custom_call.1} parent=1 // pred_check_branch
      %73 = sbr.rel (0) target = $region21
    $region20: #{tpu_custom_call.1} parent=1 // pred_region
      %75 = vsyncadd [#allocation9], 0
      %s76 = sshll.u32 %s4, 4
      %s77 = int_to_ptr.hbm [resolvable:$true] %s76
      %s78 = sshll.u32 [#allocation10], 4
      %s79 = int_to_ptr.vmem [resolvable:$true] %s78
      %84 = dma.hbm_to_vmem [thread:$0]  %s77, 512, %s79, [#allocation9], 128, 128, 8
    $region21: #{tpu_custom_call.1} parent=1 // pred_fallthru
      _
    // Predicated region
    $region22: #{tpu_custom_call.1} parent=1 // pred_check
      _
    $region23: #{tpu_custom_call.1} parent=1 // pred_check_branch
      %86 = sbr.rel (0) target = $region25
    $region24: #{tpu_custom_call.1} parent=1 // pred_region
      %88 = vsyncadd [#allocation12], 0
      %s89 = sshll.u32 %s5, 4
      %s90 = int_to_ptr.hbm [resolvable:$true] %s89
      %s91 = sshll.u32 [#allocation11], 4
      %s92 = int_to_ptr.vmem [resolvable:$true] %s91
      %97 = dma.hbm_to_vmem [thread:$0]  %s90, 512, %s92, [#allocation12], 128, 128, 8
    $region25: #{tpu_custom_call.1} parent=1 // pred_fallthru
      _
    // Predicated region
    $region26: #{tpu_custom_call.1} parent=1 // pred_check
      _
    $region27: #{tpu_custom_call.1} parent=1 // pred_check_branch
      %99 = sbr.rel (0) target = $region29
    $region28: #{tpu_custom_call.1} parent=1 // pred_region
      %101 = dma.done [#allocation3], 256
    $region29: #{tpu_custom_call.1} parent=1 // pred_fallthru
      _
    // Predicated region
    $region30: #{tpu_custom_call.1} parent=1 // pred_check
      _
    $region31: #{tpu_custom_call.1} parent=1 // pred_check_branch
      %103 = sbr.rel (0) target = $region33
    $region32: #{tpu_custom_call.1} parent=1 // pred_region
      %105 = dma.done [#allocation6], 256
    $region33: #{tpu_custom_call.1} parent=1 // pred_fallthru
      _
    // Predicated region
    $region34: #{tpu_custom_call.1} parent=1 // pred_check
      _
    $region35: #{tpu_custom_call.1} parent=1 // pred_check_branch
      %107 = sbr.rel (0) target = $region37
    $region36: #{tpu_custom_call.1} parent=1 // pred_region
      %109 = dma.done [#allocation6], 256
    $region37: #{tpu_custom_call.1} parent=1 // pred_fallthru
      _
    // Predicated region
    $region38: #{tpu_custom_call.1} parent=1 // pred_check
      _
    $region39: #{tpu_custom_call.1} parent=1 // pred_check_branch
      %111 = sbr.rel (0) target = $region41
    $region40: #{tpu_custom_call.1} parent=1 // pred_region
      %113 = dma.done [#allocation9], 512
    $region41: #{tpu_custom_call.1} parent=1 // pred_fallthru
      _
    // Predicated region
    $region42: #{tpu_custom_call.1} parent=1 // pred_check
      _
    $region43: #{tpu_custom_call.1} parent=1 // pred_check_branch
      %115 = sbr.rel (0) target = $region45
    $region44: #{tpu_custom_call.1} parent=1 // pred_region
      %117 = dma.done [#allocation9], 512
    $region45: #{tpu_custom_call.1} parent=1 // pred_fallthru
      _
    // Predicated region
    $region46: #{tpu_custom_call.1} parent=1 // pred_check
      _
    $region47: #{tpu_custom_call.1} parent=1 // pred_check_branch
      %119 = sbr.rel (0) target = $region49
    $region48: #{tpu_custom_call.1} parent=1 // pred_region
      %121 = dma.done [#allocation12], 512
    $region49: #{tpu_custom_call.1} parent=1 // pred_fallthru
      _
    %v122 = vld [vmem:[#allocation2] sm:$0xff]
    %v123 = vld [vmem:[#allocation2 + $0x8] sm:$0xff]
    %v124 = vld [vmem:[#allocation8] sm:$0xff]
    %v125 = vld [vmem:[#allocation8 + $0x8] sm:$0xff]
    %v126 = vld [vmem:[#allocation8 + $0x10] sm:$0xff]
    %v127 = vld [vmem:[#allocation8 + $0x18] sm:$0xff]
    %vm128 = vcmask 261120
    %v130 = vsel %vm128, %v122, 0
    %v133 = vsel %vm128, %v123, 0
    %v136 = vsel %vm128, %v124, 0
    %v139 = vsel %vm128, %v125, 0
    %v142 = vsel %vm128, %v126, 0
    %v145 = vsel %vm128, %v127, 0
    %147 = vmatpush.xpose.msra.mxu0 0.0
    %148 = vmatpush.xpose.msra.mxu0 0.0
    %149 = vmatpush.xpose.msra.mxu0 0.0
    %150 = vmatpush.xpose.msra.mxu0 0.0
    %151 = vmatpush.xpose.msra.mxu0 0.0
    %152 = vmatpush.xpose.msra.mxu0 0.0
    %153 = vmatpush.xpose.msra.mxu0 0.0
    %154 = vmatpush.xpose.msra.mxu0 0.0
    %155 = vmatpush.xpose.msra.mxu0 0.0
    %156 = vmatpush.xpose.msra.mxu0 0.0
    %157 = vmatpush.xpose.msra.mxu0 0.0
    %158 = vmatpush.xpose.msra.mxu0 0.0
    %159 = vmatpush.xpose.msra.mxu0 %v145
    %160 = vmatpush.xpose.msra.mxu0 %v142
    %161 = vmatpush.xpose.msra.mxu0 %v139
    %162 = vmatpush.xpose.msra.mxu0 %v136
    %163 = vmatmul.f32.gmra.mxu0 %v130
    %v164 = vpop.f32.mrf.mxu0
    %v165 = vadd.f32 0.0, %v164
    %166 = vmatmul.f32.gmra.mxu0 %v133
    %v167 = vpop.f32.mrf.mxu0
    %v168 = vadd.f32 0.0, %v167
    %169 = vdwg.mxu0
    %170 = vst.msk [vmem:[#allocation13] sm:$0xff] %vm128, %v165
    %171 = vst.msk [vmem:[#allocation13 + $0x8] sm:$0xff] %vm128, %v168
    %v172 = vld [vmem:[#allocation5] sm:$0xff]
    %v173 = vld [vmem:[#allocation5 + $0x8] sm:$0xff]
    %v174 = vld [vmem:[#allocation10] sm:$0xff]
    %v175 = vld [vmem:[#allocation10 + $0x8] sm:$0xff]
    %v176 = vld [vmem:[#allocation10 + $0x10] sm:$0xff]
    %v177 = vld [vmem:[#allocation10 + $0x18] sm:$0xff]
    %v179 = vsel %vm128, %v172, 0
    %v182 = vsel %vm128, %v173, 0
    %v185 = vsel %vm128, %v174, 0
    %v188 = vsel %vm128, %v175, 0
    %v191 = vsel %vm128, %v176, 0
    %v194 = vsel %vm128, %v177, 0
    %196 = vmatpush.xpose.msra.mxu0 0.0
    %197 = vmatpush.xpose.msra.mxu0 0.0
    %198 = vmatpush.xpose.msra.mxu0 0.0
    %199 = vmatpush.xpose.msra.mxu0 0.0
    %200 = vmatpush.xpose.msra.mxu0 0.0
    %201 = vmatpush.xpose.msra.mxu0 0.0
    %202 = vmatpush.xpose.msra.mxu0 0.0
    %203 = vmatpush.xpose.msra.mxu0 0.0
    %204 = vmatpush.xpose.msra.mxu0 0.0
    %205 = vmatpush.xpose.msra.mxu0 0.0
    %206 = vmatpush.xpose.msra.mxu0 0.0
    %207 = vmatpush.xpose.msra.mxu0 0.0
    %208 = vmatpush.xpose.msra.mxu0 %v194
    %209 = vmatpush.xpose.msra.mxu0 %v191
    %210 = vmatpush.xpose.msra.mxu0 %v188
    %211 = vmatpush.xpose.msra.mxu0 %v185
    %212 = vmatmul.f32.gmra.mxu0 %v179
    %v213 = vpop.f32.mrf.mxu0
    %v214 = vadd.f32 0.0, %v213
    %215 = vmatmul.f32.gmra.mxu0 %v182
    %v216 = vpop.f32.mrf.mxu0
    %v217 = vadd.f32 0.0, %v216
    %218 = vdwg.mxu0
    %219 = vst.msk [vmem:[#allocation14] sm:$0xff] %vm128, %v214
    %220 = vst.msk [vmem:[#allocation14 + $0x8] sm:$0xff] %vm128, %v217
    %v221 = vld [vmem:[#allocation7] sm:$0xff]
    %v222 = vld [vmem:[#allocation7 + $0x8] sm:$0xff]
    %v223 = vld [vmem:[#allocation11] sm:$0xff]
    %v224 = vld [vmem:[#allocation11 + $0x8] sm:$0xff]
    %v225 = vld [vmem:[#allocation11 + $0x10] sm:$0xff]
    %v226 = vld [vmem:[#allocation11 + $0x18] sm:$0xff]
    %v228 = vsel %vm128, %v221, 0
    %v231 = vsel %vm128, %v222, 0
    %v234 = vsel %vm128, %v223, 0
    %v237 = vsel %vm128, %v224, 0
    %v240 = vsel %vm128, %v225, 0
    %v243 = vsel %vm128, %v226, 0
    %245 = vmatpush.xpose.msra.mxu0 0.0
    %246 = vmatpush.xpose.msra.mxu0 0.0
    %247 = vmatpush.xpose.msra.mxu0 0.0
    %248 = vmatpush.xpose.msra.mxu0 0.0
    %249 = vmatpush.xpose.msra.mxu0 0.0
    %250 = vmatpush.xpose.msra.mxu0 0.0
    %251 = vmatpush.xpose.msra.mxu0 0.0
    %252 = vmatpush.xpose.msra.mxu0 0.0
    %253 = vmatpush.xpose.msra.mxu0 0.0
    %254 = vmatpush.xpose.msra.mxu0 0.0
    %255 = vmatpush.xpose.msra.mxu0 0.0
    %256 = vmatpush.xpose.msra.mxu0 0.0
    %257 = vmatpush.xpose.msra.mxu0 %v243
    %258 = vmatpush.xpose.msra.mxu0 %v240
    %259 = vmatpush.xpose.msra.mxu0 %v237
    %260 = vmatpush.xpose.msra.mxu0 %v234
    %261 = vmatmul.f32.gmra.mxu0 %v228
    %v262 = vpop.f32.mrf.mxu0
    %v263 = vadd.f32 0.0, %v262
    %264 = vmatmul.f32.gmra.mxu0 %v231
    %v265 = vpop.f32.mrf.mxu0
    %v266 = vadd.f32 0.0, %v265
    %267 = vdwg.mxu0
    %268 = vst.msk [vmem:[#allocation16] sm:$0xff] %vm128, %v263
    %269 = vst.msk [vmem:[#allocation16 + $0x8] sm:$0xff] %vm128, %v266
    // Predicated region
    $region50: #{tpu_custom_call.1} parent=1 // pred_check
      _
    $region51: #{tpu_custom_call.1} parent=1 // pred_check_branch
      %271 = sbr.rel (0) target = $region53
    $region52: #{tpu_custom_call.1} parent=1 // pred_region
      %273 = vsyncadd [#allocation4], 0
      %s274 = sshll.u32 [#allocation13], 4
      %s275 = int_to_ptr.vmem [resolvable:$true] %s274
      %s276 = sshll.u32 %s6, 4
      %s277 = int_to_ptr.hbm [resolvable:$true] %s276
      %282 = dma.vmem_to_hbm [thread:$0]  %s275, 256, %s277, [#allocation4], 128, 128, 8
    $region53: #{tpu_custom_call.1} parent=1 // pred_fallthru
      _
    // Predicated region
    $region54: #{tpu_custom_call.1} parent=1 // pred_check
      _
    $region55: #{tpu_custom_call.1} parent=1 // pred_check_branch
      %284 = sbr.rel (0) target = $region57
    $region56: #{tpu_custom_call.1} parent=1 // pred_region
      %286 = vsyncadd [#allocation15], 0
      %s287 = sshll.u32 [#allocation14], 4
      %s288 = int_to_ptr.vmem [resolvable:$true] %s287
      %s289 = sshll.u32 %s7, 4
      %s290 = int_to_ptr.hbm [resolvable:$true] %s289
      %295 = dma.vmem_to_hbm [thread:$0]  %s288, 256, %s290, [#allocation15], 128, 128, 8
    $region57: #{tpu_custom_call.1} parent=1 // pred_fallthru
      _
    // Predicated region
    $region58: #{tpu_custom_call.1} parent=1 // pred_check
      _
    $region59: #{tpu_custom_call.1} parent=1 // pred_check_branch
      %297 = sbr.rel (0) target = $region61
    $region60: #{tpu_custom_call.1} parent=1 // pred_region
      %299 = vsyncadd [#allocation15], 0
      %s300 = sshll.u32 [#allocation16], 4
      %s301 = int_to_ptr.vmem [resolvable:$true] %s300
      %s302 = sshll.u32 %s8, 4
      %s303 = int_to_ptr.hbm [resolvable:$true] %s302
      %308 = dma.vmem_to_hbm [thread:$0]  %s301, 256, %s303, [#allocation15], 128, 128, 8
    $region61: #{tpu_custom_call.1} parent=1 // pred_fallthru
      _
    // Predicated region
    $region62: #{tpu_custom_call.1} parent=1 // pred_check
      _
    $region63: #{tpu_custom_call.1} parent=1 // pred_check_branch
      %310 = sbr.rel (0) target = $region65
    $region64: #{tpu_custom_call.1} parent=1 // pred_region
      %312 = dma.done [#allocation4], 256
    $region65: #{tpu_custom_call.1} parent=1 // pred_fallthru
      _
    // Predicated region
    $region66: #{tpu_custom_call.1} parent=1 // pred_check
      _
    $region67: #{tpu_custom_call.1} parent=1 // pred_check_branch
      %314 = sbr.rel (0) target = $region69
    $region68: #{tpu_custom_call.1} parent=1 // pred_region
      %316 = dma.done [#allocation15], 256
    $region69: #{tpu_custom_call.1} parent=1 // pred_fallthru
      _
    // Predicated region
    $region70: #{tpu_custom_call.1} parent=1 // pred_check
      _
    $region71: #{tpu_custom_call.1} parent=1 // pred_check_branch
      %318 = sbr.rel (0) target = $region73
    $region72: #{tpu_custom_call.1} parent=1 // pred_region
      %320 = dma.done [#allocation15], 256
    $region73: #{tpu_custom_call.1} parent=1 // pred_fallthru
      _
    %321 = vsyncpa [#allocation3], 1
    %322 = vsyncpa [#allocation6], 1
    %323 = vsyncpa [#allocation9], 1
    %324 = vsyncpa [#allocation12], 1
    %325 = vsyncpa [#allocation4], 1
    %326 = vsyncpa [#allocation15], 1

</llo_original>
